<compile_context>
chip_gen: v7x
topology: tpu7x:2x2x1
jax: 0.10.0
libtpu: 0.0.40
codegen_flags: <defaults>
</compile_context>

<pallas_src>
import jax
import jax.numpy as jnp
from jax.experimental import pallas as pl
from jax.experimental.pallas import tpu as pltpu


def _conv1x1_kernel(x_ref, w_ref, b_ref, o_ref):
    # x_ref: (bn, C, tHW)   input pixels, C on sublanes, spatial on lanes
    # w_ref: (out_ch, C)    full 1x1-conv weight (resident every step)
    # b_ref: (out_ch, 1)    f32 bias column (broadcasts along lanes)
    # o_ref: (bn, out_ch, tHW)  lane-dense output tile
    acc = jnp.einsum(
        "oc,nch->noh", w_ref[...], x_ref[...],
        preferred_element_type=jnp.float32)
    o_ref[...] = (acc + b_ref[...]).astype(o_ref.dtype)


def _largest_divisor_leq(n, cap):
    cap = max(1, min(n, cap))
    for d in range(cap, 0, -1):
        if n % d == 0:
            return d
    return 1


def _pick_tiles(N, C, HW, itemsize, target_tile_bytes):
    """Pick (bn, thw) so each input tile is ~target_tile_bytes."""
    bytes_per_lane = max(1, C * itemsize)
    target_lanes = max(128, target_tile_bytes // bytes_per_lane)

    if HW > target_lanes:
        # Big spatial extent: one image per step, large lane-dense slab.
        bn = 1
        start = (target_lanes // 128) * 128
        thw = None
        # Prefer a multiple of 128 that divides HW exactly (no ragged edge).
        for t in range(start, 127, -128):
            if HW % t == 0:
                thw = t
                break
        if thw is None:
            thw = start  # ragged last block; Pallas masks the write
    else:
        # Small spatial extent: take the full spatial slab and batch images.
        thw = HW
        bn = _largest_divisor_leq(N, max(1, target_lanes // max(HW, 1)))

    n_blk_n = pl.cdiv(N, bn)
    n_blk_hw = pl.cdiv(HW, thw)

    # v7x has 2 TensorCores; keep >= 2 grid steps when the problem allows it.
    if n_blk_n * n_blk_hw == 1:
        if N >= 2:
            bn = _largest_divisor_leq(N, (N + 1) // 2)
        elif HW >= 256:
            thw = 128 * pl.cdiv(pl.cdiv(HW, 2), 128)
        n_blk_n = pl.cdiv(N, bn)
        n_blk_hw = pl.cdiv(HW, thw)

    return bn, thw, n_blk_n, n_blk_hw


def element_localization_forward(features, weight, bias, *,
                                 target_tile_bytes=2 << 20):
    """features: (N, C, H, W); weight: (4, C); bias: (4,) -> (N, 4, H, W)."""
    N, C, H, W = features.shape
    out_ch = weight.shape[0]
    HW = H * W
    itemsize = jnp.dtype(features.dtype).itemsize

    # Free (contiguous) reshape -- no HBM round trip, no transpose.
    x = features.reshape(N, C, HW)
    bn, thw, n_blk_n, n_blk_hw = _pick_tiles(N, C, HW, itemsize,
                                             target_tile_bytes)

    # NOTE: weight is cast to the activation dtype (bf16 activations => bf16
    # weights => half the HBM traffic).  MXU accumulation stays f32 via
    # preferred_element_type; this deviates from a pure-f32 Conv2d only in
    # the weight rounding step.
    w = weight.astype(features.dtype)                      # (out_ch, C)
    b = bias.reshape(out_ch, 1).astype(jnp.float32)        # (out_ch, 1)

    # Advisory cost estimate: op is clearly HBM-bound.
    bytes_accessed = (x.size * itemsize
                      + w.size * jnp.dtype(w.dtype).itemsize
                      + b.size * 4
                      + N * out_ch * HW * itemsize)
    cost = pl.CostEstimate(flops=2 * N * out_ch * C * HW,
                           transcendentals=0,
                           bytes_accessed=bytes_accessed)

    out = pl.pallas_call(
        _conv1x1_kernel,
        out_shape=jax.ShapeDtypeStruct((N, out_ch, HW), features.dtype),
        grid_spec=pltpu.PrefetchScalarGridSpec(
            num_scalar_prefetch=0,
            grid=(n_blk_n, n_blk_hw),
            in_specs=[
                pl.BlockSpec((bn, C, thw), lambda n, j: (n, 0, j)),   # x tile
                pl.BlockSpec((out_ch, C), lambda n, j: (0, 0)),       # weight
                pl.BlockSpec((out_ch, 1), lambda n, j: (0, 0)),       # bias
            ],
            out_specs=pl.BlockSpec((bn, out_ch, thw), lambda n, j: (n, 0, j)),
        ),
        compiler_params=pltpu.CompilerParams(
            dimension_semantics=("parallel", "parallel")),
        cost_estimate=cost,
    )(x, w, b)

    # Free reshape back to NCHW.
    return out.reshape(N, out_ch, H, W)


if __name__ == "__main__":
    # Small shapes consistent with the module: feature_dim=32, 16x16 spatial.
    N, C, H, W = 2, 32, 16, 16
    key = jax.random.PRNGKey(0)
    kx, kw, kb = jax.random.split(key, 3)

    features = jax.random.normal(kx, (N, C, H, W), dtype=jnp.float32)
    # Conv2d(feature_dim, 4, kernel_size=1): weight (4, C, 1, 1) squeezed to
    # (4, C); bias (4,).
    weight = jax.random.normal(kw, (4, C), dtype=jnp.float32) * (1.0 / jnp.sqrt(C))
    bias = jax.random.normal(kb, (4,), dtype=jnp.float32) * 0.1

    out = element_localization_forward(features, weight, bias)
    out = jax.block_until_ready(out)

    # Sanity check against a plain-JAX reference of the 1x1 conv.
    ref = jnp.einsum("nchw,oc->nohw", features, weight) + bias[None, :, None, None]
    assert out.shape == (N, 4, H, W)
    assert jnp.allclose(out, ref, atol=1e-5, rtol=1e-5)

    print("KERNEL_OK")
</pallas_src>

<mosaic_0001>
module attributes {stable_mosaic.version = 11 : i64} {
  func.func @_conv1x1_kernel(%arg0: i32, %arg1: i32, %arg2: memref<1x32x256xf32, #tpu.memory_space<vmem>>, %arg3: memref<4x32xf32, #tpu.memory_space<vmem>>, %arg4: memref<4x1xf32, #tpu.memory_space<vmem>>, %arg5: memref<1x4x256xf32, #tpu.memory_space<vmem>>) attributes {dimension_semantics = [#tpu.dimension_semantics<parallel>, #tpu.dimension_semantics<parallel>], iteration_bounds = array<i64: 2, 1>, scalar_prefetch = 0 : i64, scratch_operands = 0 : i64, tpu.core_type = #tpu.core_type<tc>, window_params = [{transform_indices = @transform_0, window_bounds = array<i64: 1, 32, 256>}, {pipeline_mode = #tpu.pipeline_mode<synchronous>, transform_indices = @transform_1, window_bounds = array<i64: 4, 32>}, {pipeline_mode = #tpu.pipeline_mode<synchronous>, transform_indices = @transform_2, window_bounds = array<i64: 4, 1>}, {transform_indices = @transform_3, window_bounds = array<i64: 1, 4, 256>}]} {
    %c0 = arith.constant 0 : index
    %c0_0 = arith.constant 0 : index
    %0 = vector.load %arg3[%c0, %c0_0] : memref<4x32xf32, #tpu.memory_space<vmem>>, vector<4x32xf32>
    %c0_1 = arith.constant 0 : index
    %c0_2 = arith.constant 0 : index
    %c0_3 = arith.constant 0 : index
    %1 = vector.load %arg2[%c0_1, %c0_2, %c0_3] : memref<1x32x256xf32, #tpu.memory_space<vmem>>, vector<1x32x256xf32>
    "tpu.trace_start"() <{level = 10 : i32, message = "oc,nch->noh"}> : () -> ()
    %cst = arith.constant dense<0.000000e+00> : vector<1x256x4xf32>
    %2 = tpu.matmul %1, %0, %cst {dimension_numbers = #tpu.dot_dimension_numbers<[1], [1], [0, 2], [0], [0, 0, 0, 2, 1, 0], [], []>} : vector<1x32x256xf32>, vector<4x32xf32>, vector<1x256x4xf32> -> vector<1x256x4xf32>
    %3 = tpu.transpose %2, [0, 2, 1] : vector<1x256x4xf32> -> vector<1x4x256xf32>
    "tpu.trace_stop"() : () -> ()
    %c0_4 = arith.constant 0 : index
    %c0_5 = arith.constant 0 : index
    %4 = vector.load %arg4[%c0_4, %c0_5] : memref<4x1xf32, #tpu.memory_space<vmem>>, vector<4x1xf32>
    %5 = vector.shape_cast %4 : vector<4x1xf32> to vector<1x4x1xf32>
    %6 = vector.broadcast %5 : vector<1x4x1xf32> to vector<1x4x256xf32>
    %7 = arith.addf %3, %6 : vector<1x4x256xf32>
    %c0_6 = arith.constant 0 : index
    %c0_7 = arith.constant 0 : index
    %c0_8 = arith.constant 0 : index
    %8 = vector.load %arg5[%c0_6, %c0_7, %c0_8] : memref<1x4x256xf32, #tpu.memory_space<vmem>>, vector<1x4x256xf32>
    tpu.vector_store %arg5[%c0_6, %c0_7, %c0_8], %7 {strides = array<i32>} : memref<1x4x256xf32, #tpu.memory_space<vmem>>, vector<1x4x256xf32>,
    return
  }
  func.func @transform_0(%arg0: i32, %arg1: i32) -> (i32, i32, i32) {
    %c0_i32 = arith.constant 0 : i32
    %c0_i32_0 = arith.constant 0 : i32
    return %arg0, %c0_i32, %arg1 : i32, i32, i32
  }
  func.func @transform_1(%arg0: i32, %arg1: i32) -> (i32, i32) {
    %c0_i32 = arith.constant 0 : i32
    %c0_i32_0 = arith.constant 0 : i32
    %c0_i32_1 = arith.constant 0 : i32
    return %c0_i32, %c0_i32_0 : i32, i32
  }
  func.func @transform_2(%arg0: i32, %arg1: i32) -> (i32, i32) {
    %c0_i32 = arith.constant 0 : i32
    %c0_i32_0 = arith.constant 0 : i32
    %c0_i32_1 = arith.constant 0 : i32
    return %c0_i32, %c0_i32_0 : i32, i32
  }
  func.func @transform_3(%arg0: i32, %arg1: i32) -> (i32, i32, i32) {
    %c0_i32 = arith.constant 0 : i32
    %c0_i32_0 = arith.constant 0 : i32
    return %arg0, %c0_i32, %arg1 : i32, i32, i32
  }
}

</mosaic_0001>

<llo_original>
// kernel: tpu_custom_call.1
$region0: #{tpu_custom_call.1}
  #allocation0 [shape = 'u32[]', space=smem, size = 0x4, offset = 0x4, fixed_abs, tag = 'smem constant byte address 0x4 - core index']
  #allocation1 [shape = 'u32[144,128]{1,0:T(1,128)}', space=vmem, size = 0x12000, scoped, tag = 'internal scratch']
  %s0 = inlined_call_operand.hbm [shape: f32[2,32,256], index: 0, kind: input, shape index: {}]
  %s1 = inlined_call_operand.vmem [shape: f32[4,32], index: 1, kind: input, shape index: {}]
  %s2 = inlined_call_operand.vmem [shape: f32[4,1], index: 2, kind: input, shape index: {}]
  %s3 = inlined_call_operand.hbm [shape: f32[2,4,256], index: 3, kind: output, shape index: {}]
  %s4 = sld [smem:[#allocation0]]
  $region49: #{tpu_custom_call.1} parent=0
    _
  %s6 = ssub.s32 1, %s4
  %s7 = scalar_select 0, %s6, %s4
  $region1: #{tpu_custom_call.1} parent=0
    #allocation2 [shape = 'u8[65536]{0}', space=vmem, size = 0x10000, scoped, tag = 'input window, operand 0']
    #allocation3 [shape = 's32[2]{0}', space=sflag, size = 0x8, scoped, tag = 'scoped memory for tpu_custom_call.1']
    #allocation4 [shape = 's32[2]{0}', space=sflag, size = 0x8, scoped, tag = 'scoped memory for tpu_custom_call.1']
    #allocation5 [shape = 'u8[8192]{0}', space=vmem, size = 0x2000, scoped, tag = 'output window, operand 0']
    %8 = vsyncpa [#allocation3], 0
    %s9 = scalar_lea.sflag [#allocation3], 1
    %10 = vsyncpa %s9, 0
    %11 = vsyncpa [#allocation4], 0
    %s12 = scalar_lea.sflag [#allocation4], 1
    %13 = vsyncpa %s12, 0
    loop: start=0, step=1, limit=4
    $region2: #{tpu_custom_call.1} parent=1 // loop_pre_header
      _
    $region3: #{tpu_custom_call.1} parent=1 // loop_header
      %s15 = sphi 0, %s19
      %p16 = scmp.ge.s32.totalorder %s15, 4
      %s22 = sphi 0, %s34
      %s23 = sphi 0, %s30
      %s24 = sphi 0, %s22
      %s25 = sphi 0, %s23
      %s26 = sphi 0, %s24
      %s27 = sphi 0, %s25
      %s39 = sphi 0, %s41
      %s42 = sphi 0, %s39
      %s43 = sphi 0, %s42
      %s59 = sphi 0, %s43
      %s63 = sphi 0, %s63
      %s65 = sphi 0, %s63
      %s66 = sphi 0, %s65
      %s80 = sphi 0, %s66
      %s84 = sphi 0, %s84
      %s86 = sphi 0, %s84
      %s87 = sphi 0, %s86
      %s101 = sphi 0, %s87
      %s109 = sphi 0, %s111
      %s112 = sphi 0, %s109
      %s113 = sphi 0, %s112
      %s129 = sphi 0, %s113
    $region4: #{tpu_custom_call.1} parent=1 // loop_header_branch
      %18 = sbr.rel (%p16) target = $region8
    $region5: #{tpu_custom_call.1} parent=1 // loop_body
      %s20 = ssub.s32 %s15, 1
      %s21 = ssub.s32 %s15, 2
      %s28 = sadd.s32 1, %s23
      %p29 = scmp.ge.s32.totalorder %s28, 1
      %s30 = scalar_select %p29, 0, %s28
      %s31 = sadd.s32 1, %s22
      %s32 = scalar_select %p29, %s31, %s22
      %p33 = scmp.ge.s32.totalorder %s32, 2
      %s34 = scalar_select %p33, 0, %s32
      %s35 = ssub.s32 %s22, %s34
      %s36 = ssub.s32 %s23, %s30
      %s37 = sor.u32 %s35, %s36
      %p38 = scmp.eq.s32.totalorder %s37, 0
      %s40 = sadd.s32 %s39, 1
      %s41 = scalar_select %p38, %s39, %s40
      %p44 = pneg %p38
      %p45 = scmp.eq.s32.totalorder %s15, 1
      %p46 = por %p44, %p45
      %p47 = scmp.ne.s32.totalorder %s39, %s42
      %p48 = scmp.eq.s32.totalorder %s15, 0
      %p49 = por %p47, %p48
      %p50 = scmp.ne.s32.totalorder %s39, %s42
      %p51 = scmp.eq.s32.totalorder %s20, 1
      %p52 = por %p50, %p51
      %p53 = scmp.ne.s32.totalorder %s42, %s43
      %p54 = scmp.eq.s32.totalorder %s20, 0
      %p55 = por %p53, %p54
      %p56 = scmp.ne.s32.totalorder %s42, %s43
      %p57 = scmp.eq.s32.totalorder %s21, 1
      %p58 = por %p56, %p57
      %p60 = scmp.ne.s32.totalorder %s43, %s59
      %p61 = scmp.eq.s32.totalorder %s21, 0
      %p62 = por %p60, %p61
      %s64 = sadd.s32 %s63, 1
      %p67 = scmp.eq.s32.totalorder %s15, 1
      %p68 = scmp.ne.s32.totalorder %s63, %s65
      %p69 = scmp.eq.s32.totalorder %s15, 0
      %p70 = por %p68, %p69
      %p71 = scmp.ne.s32.totalorder %s63, %s65
      %p72 = scmp.eq.s32.totalorder %s20, 1
      %p73 = por %p71, %p72
      %p74 = scmp.ne.s32.totalorder %s65, %s66
      %p75 = scmp.eq.s32.totalorder %s20, 0
      %p76 = por %p74, %p75
      %p77 = scmp.ne.s32.totalorder %s65, %s66
      %p78 = scmp.eq.s32.totalorder %s21, 1
      %p79 = por %p77, %p78
      %p81 = scmp.ne.s32.totalorder %s66, %s80
      %p82 = scmp.eq.s32.totalorder %s21, 0
      %p83 = por %p81, %p82
      %s85 = sadd.s32 %s84, 1
      %p88 = scmp.eq.s32.totalorder %s15, 1
      %p89 = scmp.ne.s32.totalorder %s84, %s86
      %p90 = scmp.eq.s32.totalorder %s15, 0
      %p91 = por %p89, %p90
      %p92 = scmp.ne.s32.totalorder %s84, %s86
      %p93 = scmp.eq.s32.totalorder %s20, 1
      %p94 = por %p92, %p93
      %p95 = scmp.ne.s32.totalorder %s86, %s87
      %p96 = scmp.eq.s32.totalorder %s20, 0
      %p97 = por %p95, %p96
      %p98 = scmp.ne.s32.totalorder %s86, %s87
      %p99 = scmp.eq.s32.totalorder %s21, 1
      %p100 = por %p98, %p99
      %p102 = scmp.ne.s32.totalorder %s87, %s101
      %p103 = scmp.eq.s32.totalorder %s21, 0
      %p104 = por %p102, %p103
      %s105 = ssub.s32 %s22, %s34
      %s106 = ssub.s32 %s23, %s30
      %s107 = sor.u32 %s105, %s106
      %p108 = scmp.eq.s32.totalorder %s107, 0
      %s110 = sadd.s32 %s109, 1
      %s111 = scalar_select %p108, %s109, %s110
      %p114 = pneg %p108
      %p115 = scmp.eq.s32.totalorder %s15, 1
      %p116 = por %p114, %p115
      %p117 = scmp.ne.s32.totalorder %s109, %s112
      %p118 = scmp.eq.s32.totalorder %s15, 0
      %p119 = por %p117, %p118
      %p120 = scmp.ne.s32.totalorder %s109, %s112
      %p121 = scmp.eq.s32.totalorder %s20, 1
      %p122 = por %p120, %p121
      %p123 = scmp.ne.s32.totalorder %s112, %s113
      %p124 = scmp.eq.s32.totalorder %s20, 0
      %p125 = por %p123, %p124
      %p126 = scmp.ne.s32.totalorder %s112, %s113
      %p127 = scmp.eq.s32.totalorder %s21, 1
      %p128 = por %p126, %p127
      %p130 = scmp.ne.s32.totalorder %s113, %s129
      %p131 = scmp.eq.s32.totalorder %s21, 0
      %p132 = por %p130, %p131
      %p133 = scmp.le.s32.totalorder 1, %s15
      %p134 = scmp.lt.s32.totalorder %s15, 3
      %p135 = pnand %p133, %p134
      %p136 = pneg %p135
      // Predicated region
      $region9: #{tpu_custom_call.1} parent=5 // pred_check
        _
      $region10: #{tpu_custom_call.1} parent=5 // pred_check_branch
        %138 = sbr.rel (%p135) target = $region12
      $region11: #{tpu_custom_call.1} parent=5 // pred_region
        %s139 = ssub.s32 %s15, 1
        // Predicated region
        $region13: #{tpu_custom_call.1} parent=11 // pred_check
          %p140 = pneg %p76
        $region14: #{tpu_custom_call.1} parent=11 // pred_check_branch
          %142 = sbr.rel (%p140) target = $region16
        $region15: #{tpu_custom_call.1} parent=11 // pred_region
          _
        $region16: #{tpu_custom_call.1} parent=11 // pred_fallthru
          _
        // Predicated region
        $region17: #{tpu_custom_call.1} parent=11 // pred_check
          %p143 = pneg %p97
        $region18: #{tpu_custom_call.1} parent=11 // pred_check_branch
          %145 = sbr.rel (%p143) target = $region20
        $region19: #{tpu_custom_call.1} parent=11 // pred_region
          _
        $region20: #{tpu_custom_call.1} parent=11 // pred_fallthru
          _
      $region12: #{tpu_custom_call.1} parent=5 // pred_fallthru
        _
      %p146 = scmp.lt.s32.totalorder %s15, 2
      // Predicated region
      $region21: #{tpu_custom_call.1} parent=5 // pred_check
        %p147 = pneg %p146
      $region22: #{tpu_custom_call.1} parent=5 // pred_check_branch
        %149 = sbr.rel (%p147) target = $region24
      $region23: #{tpu_custom_call.1} parent=5 // pred_region
        // Predicated region
        $region25: #{tpu_custom_call.1} parent=23 // pred_check
          %p150 = pneg %p49
        $region26: #{tpu_custom_call.1} parent=23 // pred_check_branch
          %152 = sbr.rel (%p150) target = $region28
        $region27: #{tpu_custom_call.1} parent=23 // pred_region
          %s153 = sand.u32 %s39, 1
          %s154 = scalar_lea.sflag [#allocation3], %s153
          %s155 = sand.u32 %s39, 1
          %s156 = smul.addr %s155, 64
          %s157 = scalar_lea.vmem [#allocation2], %s156
          %s158 = smul.u32 2, %s23
          %s160 = ssub.s32 1024, 1024
          %161 = vsyncadd %s154, %s160
          %s162 = smul.addr %s22, 8
          %s163 = sadd.s32 %s158, %s162
          %s164 = smul.addr %s163, 128
          %s165 = scalar_lea.hbm %s0, %s164
          %s166 = sshll.u32 %s157, 4
          %s167 = int_to_ptr.vmem [resolvable:$true] %s166
          %172 = dma.hbm_to_vmem [thread:$0]  %s165, 1024, %s167, %s154, 256, 256, 16
        $region28: #{tpu_custom_call.1} parent=23 // pred_fallthru
          _
      $region24: #{tpu_custom_call.1} parent=5 // pred_fallthru
        _
      %p173 = scmp.le.s32.totalorder 1, %s15
      %p174 = scmp.lt.s32.totalorder %s15, 3
      %p175 = pnand %p173, %p174
      %p176 = pneg %p175
      // Predicated region
      $region29: #{tpu_custom_call.1} parent=5 // pred_check
        _
      $region30: #{tpu_custom_call.1} parent=5 // pred_check_branch
        %178 = sbr.rel (%p175) target = $region32
      $region31: #{tpu_custom_call.1} parent=5 // pred_region
        %s179 = ssub.s32 %s15, 1
        %s180 = sand.u32 %s42, 1
        %s181 = scalar_lea.sflag [#allocation3], %s180
        %s182 = sand.u32 %s42, 1
        %s183 = smul.addr %s182, 64
        %s184 = scalar_lea.vmem [#allocation2], %s183
        // Predicated region
        $region33: #{tpu_custom_call.1} parent=31 // pred_check
          %p185 = pneg %p55
        $region34: #{tpu_custom_call.1} parent=31 // pred_check_branch
          %187 = sbr.rel (%p185) target = $region36
        $region35: #{tpu_custom_call.1} parent=31 // pred_region
          %188 = dma.done %s181, 1024
        $region36: #{tpu_custom_call.1} parent=31 // pred_fallthru
          _
        %s189 = sand.u32 %s42, 1
        %s190 = scalar_lea.sflag [#allocation3], %s189
        %s191 = sand.u32 %s42, 1
        %s192 = smul.addr %s191, 64
        %s193 = scalar_lea.vmem [#allocation2], %s192
        %p194 = pneg %p55
        %p195 = pneg %p52
        %p196 = pneg %p76
        %p197 = pneg %p73
        %p198 = pneg %p97
        %p199 = pneg %p94
        %p200 = pneg %p125
        %p201 = pneg %p122
        %s202 = sand.u32 %s112, 1
        %s203 = scalar_lea.sflag [#allocation4], %s202
        %s204 = sand.u32 %s112, 1
        %s205 = smul.addr %s204, 8
        %s206 = scalar_lea.vmem [#allocation5], %s205
        %s207 = smul.u32 2, %s25
        %s208 = smul.u32 2, %s25
        %v209 = vld [vmem:[%s1] sm:$0xf]
        %v210 = vld [vmem:[%s184] sm:$0xff]
        %v211 = vld [vmem:[%s184 + $0x8] sm:$0xff]
        %v212 = vld [vmem:[%s184 + $0x10] sm:$0xff]
        %v213 = vld [vmem:[%s184 + $0x18] sm:$0xff]
        %v214 = vld [vmem:[%s184 + $0x20] sm:$0xff]
        %v215 = vld [vmem:[%s184 + $0x28] sm:$0xff]
        %v216 = vld [vmem:[%s184 + $0x30] sm:$0xff]
        %v217 = vld [vmem:[%s184 + $0x38] sm:$0xff]
        %218 = vxpose.xlu0.b32.start [1/16] %v210, 128
        %219 = vxpose.xlu0.b32.cont [2/16] %v212, 128
        %220 = vxpose.xlu0.b32.cont [3/16] %v214, 128
        %221 = vxpose.xlu0.b32.cont [4/16] %v216, 128
        %222 = vxpose.xlu0.b32.cont [5/16] 0.0, 128
        %223 = vxpose.xlu0.b32.cont [6/16] 0.0, 128
        %224 = vxpose.xlu0.b32.cont [7/16] 0.0, 128
        %225 = vxpose.xlu0.b32.cont [8/16] 0.0, 128
        %226 = vxpose.xlu0.b32.cont [9/16] 0.0, 128
        %227 = vxpose.xlu0.b32.cont [10/16] 0.0, 128
        %228 = vxpose.xlu0.b32.cont [11/16] 0.0, 128
        %229 = vxpose.xlu0.b32.cont [12/16] 0.0, 128
        %230 = vxpose.xlu0.b32.cont [13/16] 0.0, 128
        %231 = vxpose.xlu0.b32.cont [14/16] 0.0, 128
        %232 = vxpose.xlu0.b32.cont [15/16] 0.0, 128
        %233 = vxpose.xlu0.b32.end [16/16] 0.0, 128
        %v234 = vpop.trf.xlu0
        %v235 = vpop.trf.xlu0
        %v236 = vpop.trf.xlu0
        %v237 = vpop.trf.xlu0
        %v238 = vpop.trf.xlu0
        %v239 = vpop.trf.xlu0
        %v240 = vpop.trf.xlu0
        %v241 = vpop.trf.xlu0
        %v242 = vpop.trf.xlu0
        %v243 = vpop.trf.xlu0
        %v244 = vpop.trf.xlu0
        %v245 = vpop.trf.xlu0
        %v246 = vpop.trf.xlu0
        %v247 = vpop.trf.xlu0
        %v248 = vpop.trf.xlu0
        %v249 = vpop.trf.xlu0
        %250 = vxpose.xlu0.b32.start [1/16] %v211, 128
        %251 = vxpose.xlu0.b32.cont [2/16] %v213, 128
        %252 = vxpose.xlu0.b32.cont [3/16] %v215, 128
        %253 = vxpose.xlu0.b32.cont [4/16] %v217, 128
        %254 = vxpose.xlu0.b32.cont [5/16] 0.0, 128
        %255 = vxpose.xlu0.b32.cont [6/16] 0.0, 128
        %256 = vxpose.xlu0.b32.cont [7/16] 0.0, 128
        %257 = vxpose.xlu0.b32.cont [8/16] 0.0, 128
        %258 = vxpose.xlu0.b32.cont [9/16] 0.0, 128
        %259 = vxpose.xlu0.b32.cont [10/16] 0.0, 128
        %260 = vxpose.xlu0.b32.cont [11/16] 0.0, 128
        %261 = vxpose.xlu0.b32.cont [12/16] 0.0, 128
        %262 = vxpose.xlu0.b32.cont [13/16] 0.0, 128
        %263 = vxpose.xlu0.b32.cont [14/16] 0.0, 128
        %264 = vxpose.xlu0.b32.cont [15/16] 0.0, 128
        %265 = vxpose.xlu0.b32.end [16/16] 0.0, 128
        %v266 = vpop.trf.xlu0
        %v267 = vpop.trf.xlu0
        %v268 = vpop.trf.xlu0
        %v269 = vpop.trf.xlu0
        %v270 = vpop.trf.xlu0
        %v271 = vpop.trf.xlu0
        %v272 = vpop.trf.xlu0
        %v273 = vpop.trf.xlu0
        %v274 = vpop.trf.xlu0
        %v275 = vpop.trf.xlu0
        %v276 = vpop.trf.xlu0
        %v277 = vpop.trf.xlu0
        %v278 = vpop.trf.xlu0
        %v279 = vpop.trf.xlu0
        %v280 = vpop.trf.xlu0
        %v281 = vpop.trf.xlu0
        %vm282 = vcmask 261120
        %v284 = vsel %vm282, %v234, 0
        %v287 = vsel %vm282, %v235, 0
        %v290 = vsel %vm282, %v236, 0
        %v293 = vsel %vm282, %v237, 0
        %v296 = vsel %vm282, %v238, 0
        %v299 = vsel %vm282, %v239, 0
        %v302 = vsel %vm282, %v240, 0
        %v305 = vsel %vm282, %v241, 0
        %v308 = vsel %vm282, %v242, 0
        %v311 = vsel %vm282, %v243, 0
        %v314 = vsel %vm282, %v244, 0
        %v317 = vsel %vm282, %v245, 0
        %v320 = vsel %vm282, %v246, 0
        %v323 = vsel %vm282, %v247, 0
        %v326 = vsel %vm282, %v248, 0
        %v329 = vsel %vm282, %v249, 0
        %v332 = vsel %vm282, %v266, 0
        %v335 = vsel %vm282, %v267, 0
        %v338 = vsel %vm282, %v268, 0
        %v341 = vsel %vm282, %v269, 0
        %v344 = vsel %vm282, %v270, 0
        %v347 = vsel %vm282, %v271, 0
        %v350 = vsel %vm282, %v272, 0
        %v353 = vsel %vm282, %v273, 0
        %v356 = vsel %vm282, %v274, 0
        %v359 = vsel %vm282, %v275, 0
        %v362 = vsel %vm282, %v276, 0
        %v365 = vsel %vm282, %v277, 0
        %v368 = vsel %vm282, %v278, 0
        %v371 = vsel %vm282, %v279, 0
        %v374 = vsel %vm282, %v280, 0
        %v377 = vsel %vm282, %v281, 0
        %v380 = vsel %vm282, %v209, 0
        %382 = vmatprep.subr.mxu0 0.0
        %383 = vmatpush1.xpose.msra.mxu0 %v380
        %384 = vmatprep.subr.mxu0 0.0
        %385 = vmatpush1.xpose.msra.mxu0 0.0
        %386 = vmatprep.subr.mxu0 0.0
        %387 = vmatpush1.xpose.msra.mxu0 0.0
        %388 = vmatprep.subr.mxu0 0.0
        %389 = vmatpush1.xpose.msra.mxu0 0.0
        %390 = vmatprep.subr.mxu0 0.0
        %391 = vmatpush1.xpose.msra.mxu0 0.0
        %392 = vmatprep.subr.mxu0 0.0
        %393 = vmatpush1.xpose.msra.mxu0 0.0
        %394 = vmatprep.subr.mxu0 0.0
        %395 = vmatpush1.xpose.msra.mxu0 0.0
        %396 = vmatprep.subr.mxu0 0.0
        %397 = vmatpush1.xpose.msra.mxu0 0.0
        %398 = vmatprep.subr.mxu0 0.0
        %399 = vmatpush1.xpose.msra.mxu0 0.0
        %400 = vmatprep.subr.mxu0 0.0
        %401 = vmatpush1.xpose.msra.mxu0 0.0
        %402 = vmatprep.subr.mxu0 0.0
        %403 = vmatpush1.xpose.msra.mxu0 0.0
        %404 = vmatprep.subr.mxu0 0.0
        %405 = vmatpush1.xpose.msra.mxu0 0.0
        %406 = vmatprep.subr.mxu0 0.0
        %407 = vmatpush1.xpose.msra.mxu0 0.0
        %408 = vmatprep.subr.mxu0 0.0
        %409 = vmatpush1.xpose.msra.mxu0 0.0
        %410 = vmatprep.subr.mxu0 0.0
        %411 = vmatpush1.xpose.msra.mxu0 0.0
        %412 = vmatprep.subr.mxu0 0.0
        %413 = vmatpush1.xpose.msra.mxu0 0.0
        %414 = vmatprep.subr.mxu0 0.0
        %415 = vmatpush1.xpose.msra.mxu0 0.0
        %416 = vmatprep.subr.mxu0 0.0
        %417 = vmatpush1.xpose.msra.mxu0 0.0
        %418 = vmatprep.subr.mxu0 0.0
        %419 = vmatpush1.xpose.msra.mxu0 0.0
        %420 = vmatprep.subr.mxu0 0.0
        %421 = vmatpush1.xpose.msra.mxu0 0.0
        %422 = vmatprep.subr.mxu0 0.0
        %423 = vmatpush1.xpose.msra.mxu0 0.0
        %424 = vmatprep.subr.mxu0 0.0
        %425 = vmatpush1.xpose.msra.mxu0 0.0
        %426 = vmatprep.subr.mxu0 0.0
        %427 = vmatpush1.xpose.msra.mxu0 0.0
        %428 = vmatprep.subr.mxu0 0.0
        %429 = vmatpush1.xpose.msra.mxu0 0.0
        %430 = vmatprep.subr.mxu0 0.0
        %431 = vmatpush1.xpose.msra.mxu0 0.0
        %432 = vmatprep.subr.mxu0 0.0
        %433 = vmatpush1.xpose.msra.mxu0 0.0
        %434 = vmatprep.subr.mxu0 0.0
        %435 = vmatpush1.xpose.msra.mxu0 0.0
        %436 = vmatprep.subr.mxu0 0.0
        %437 = vmatpush1.xpose.msra.mxu0 0.0
        %438 = vmatprep.subr.mxu0 0.0
        %439 = vmatpush1.xpose.msra.mxu0 0.0
        %440 = vmatprep.subr.mxu0 0.0
        %441 = vmatpush1.xpose.msra.mxu0 0.0
        %442 = vmatprep.subr.mxu0 0.0
        %443 = vmatpush1.xpose.msra.mxu0 0.0
        %444 = vmatprep.subr.mxu0 0.0
        %445 = vmatpush1.xpose.msra.mxu0 0.0
        %446 = vmatprep.mubr.f32.mxu0 0.0
        %447 = vmatmul.mubr.f32.gmra.mrb[0].mxu0 %v284
        %v448 = vpop.f32.mrb[0].mxu0
        %v449 = vadd.f32 0.0, %v448
        %v450 = vpop.f32.mrb[0].mxu0
        %451 = vmatprep.mubr.f32.mxu0 0.0
        %452 = vmatmul.mubr.f32.gmra.mrb[0].mxu0 %v287
        %v453 = vpop.f32.mrb[0].mxu0
        %v454 = vadd.f32 0.0, %v453
        %v455 = vpop.f32.mrb[0].mxu0
        %456 = vmatprep.mubr.f32.mxu0 0.0
        %457 = vmatmul.mubr.f32.gmra.mrb[0].mxu0 %v290
        %v458 = vpop.f32.mrb[0].mxu0
        %v459 = vadd.f32 0.0, %v458
        %v460 = vpop.f32.mrb[0].mxu0
        %461 = vmatprep.mubr.f32.mxu0 0.0
        %462 = vmatmul.mubr.f32.gmra.mrb[0].mxu0 %v293
        %v463 = vpop.f32.mrb[0].mxu0
        %v464 = vadd.f32 0.0, %v463
        %v465 = vpop.f32.mrb[0].mxu0
        %466 = vmatprep.mubr.f32.mxu0 0.0
        %467 = vmatmul.mubr.f32.gmra.mrb[0].mxu0 %v296
        %v468 = vpop.f32.mrb[0].mxu0
        %v469 = vadd.f32 0.0, %v468
        %v470 = vpop.f32.mrb[0].mxu0
        %471 = vmatprep.mubr.f32.mxu0 0.0
        %472 = vmatmul.mubr.f32.gmra.mrb[0].mxu0 %v299
        %v473 = vpop.f32.mrb[0].mxu0
        %v474 = vadd.f32 0.0, %v473
        %v475 = vpop.f32.mrb[0].mxu0
        %476 = vmatprep.mubr.f32.mxu0 0.0
        %477 = vmatmul.mubr.f32.gmra.mrb[0].mxu0 %v302
        %v478 = vpop.f32.mrb[0].mxu0
        %v479 = vadd.f32 0.0, %v478
        %v480 = vpop.f32.mrb[0].mxu0
        %481 = vmatprep.mubr.f32.mxu0 0.0
        %482 = vmatmul.mubr.f32.gmra.mrb[0].mxu0 %v305
        %v483 = vpop.f32.mrb[0].mxu0
        %v484 = vadd.f32 0.0, %v483
        %v485 = vpop.f32.mrb[0].mxu0
        %486 = vmatprep.mubr.f32.mxu0 0.0
        %487 = vmatmul.mubr.f32.gmra.mrb[0].mxu0 %v308
        %v488 = vpop.f32.mrb[0].mxu0
        %v489 = vadd.f32 0.0, %v488
        %v490 = vpop.f32.mrb[0].mxu0
        %491 = vmatprep.mubr.f32.mxu0 0.0
        %492 = vmatmul.mubr.f32.gmra.mrb[0].mxu0 %v311
        %v493 = vpop.f32.mrb[0].mxu0
        %v494 = vadd.f32 0.0, %v493
        %v495 = vpop.f32.mrb[0].mxu0
        %496 = vmatprep.mubr.f32.mxu0 0.0
        %497 = vmatmul.mubr.f32.gmra.mrb[0].mxu0 %v314
        %v498 = vpop.f32.mrb[0].mxu0
        %v499 = vadd.f32 0.0, %v498
        %v500 = vpop.f32.mrb[0].mxu0
        %501 = vmatprep.mubr.f32.mxu0 0.0
        %502 = vmatmul.mubr.f32.gmra.mrb[0].mxu0 %v317
        %v503 = vpop.f32.mrb[0].mxu0
        %v504 = vadd.f32 0.0, %v503
        %v505 = vpop.f32.mrb[0].mxu0
        %506 = vmatprep.mubr.f32.mxu0 0.0
        %507 = vmatmul.mubr.f32.gmra.mrb[0].mxu0 %v320
        %v508 = vpop.f32.mrb[0].mxu0
        %v509 = vadd.f32 0.0, %v508
        %v510 = vpop.f32.mrb[0].mxu0
        %511 = vmatprep.mubr.f32.mxu0 0.0
        %512 = vmatmul.mubr.f32.gmra.mrb[0].mxu0 %v323
        %v513 = vpop.f32.mrb[0].mxu0
        %v514 = vadd.f32 0.0, %v513
        %v515 = vpop.f32.mrb[0].mxu0
        %516 = vmatprep.mubr.f32.mxu0 0.0
        %517 = vmatmul.mubr.f32.gmra.mrb[0].mxu0 %v326
        %v518 = vpop.f32.mrb[0].mxu0
        %v519 = vadd.f32 0.0, %v518
        %v520 = vpop.f32.mrb[0].mxu0
        %521 = vmatprep.mubr.f32.mxu0 0.0
        %522 = vmatmul.mubr.f32.gmra.mrb[0].mxu0 %v329
        %v523 = vpop.f32.mrb[0].mxu0
        %v524 = vadd.f32 0.0, %v523
        %v525 = vpop.f32.mrb[0].mxu0
        %526 = vmatprep.mubr.f32.mxu0 0.0
        %527 = vmatmul.mubr.f32.gmra.mrb[0].mxu0 %v332
        %v528 = vpop.f32.mrb[0].mxu0
        %v529 = vadd.f32 0.0, %v528
        %v530 = vpop.f32.mrb[0].mxu0
        %531 = vmatprep.mubr.f32.mxu0 0.0
        %532 = vmatmul.mubr.f32.gmra.mrb[0].mxu0 %v335
        %v533 = vpop.f32.mrb[0].mxu0
        %v534 = vadd.f32 0.0, %v533
        %v535 = vpop.f32.mrb[0].mxu0
        %536 = vmatprep.mubr.f32.mxu0 0.0
        %537 = vmatmul.mubr.f32.gmra.mrb[0].mxu0 %v338
        %v538 = vpop.f32.mrb[0].mxu0
        %v539 = vadd.f32 0.0, %v538
        %v540 = vpop.f32.mrb[0].mxu0
        %541 = vmatprep.mubr.f32.mxu0 0.0
        %542 = vmatmul.mubr.f32.gmra.mrb[0].mxu0 %v341
        %v543 = vpop.f32.mrb[0].mxu0
        %v544 = vadd.f32 0.0, %v543
        %v545 = vpop.f32.mrb[0].mxu0
        %546 = vmatprep.mubr.f32.mxu0 0.0
        %547 = vmatmul.mubr.f32.gmra.mrb[0].mxu0 %v344
        %v548 = vpop.f32.mrb[0].mxu0
        %v549 = vadd.f32 0.0, %v548
        %v550 = vpop.f32.mrb[0].mxu0
        %551 = vmatprep.mubr.f32.mxu0 0.0
        %552 = vmatmul.mubr.f32.gmra.mrb[0].mxu0 %v347
        %v553 = vpop.f32.mrb[0].mxu0
        %v554 = vadd.f32 0.0, %v553
        %v555 = vpop.f32.mrb[0].mxu0
        %556 = vmatprep.mubr.f32.mxu0 0.0
        %557 = vmatmul.mubr.f32.gmra.mrb[0].mxu0 %v350
        %v558 = vpop.f32.mrb[0].mxu0
        %v559 = vadd.f32 0.0, %v558
        %v560 = vpop.f32.mrb[0].mxu0
        %561 = vmatprep.mubr.f32.mxu0 0.0
        %562 = vmatmul.mubr.f32.gmra.mrb[0].mxu0 %v353
        %v563 = vpop.f32.mrb[0].mxu0
        %v564 = vadd.f32 0.0, %v563
        %v565 = vpop.f32.mrb[0].mxu0
        %566 = vmatprep.mubr.f32.mxu0 0.0
        %567 = vmatmul.mubr.f32.gmra.mrb[0].mxu0 %v356
        %v568 = vpop.f32.mrb[0].mxu0
        %v569 = vadd.f32 0.0, %v568
        %v570 = vpop.f32.mrb[0].mxu0
        %571 = vmatprep.mubr.f32.mxu0 0.0
        %572 = vmatmul.mubr.f32.gmra.mrb[0].mxu0 %v359
        %v573 = vpop.f32.mrb[0].mxu0
        %v574 = vadd.f32 0.0, %v573
        %v575 = vpop.f32.mrb[0].mxu0
        %576 = vmatprep.mubr.f32.mxu0 0.0
        %577 = vmatmul.mubr.f32.gmra.mrb[0].mxu0 %v362
        %v578 = vpop.f32.mrb[0].mxu0
        %v579 = vadd.f32 0.0, %v578
        %v580 = vpop.f32.mrb[0].mxu0
        %581 = vmatprep.mubr.f32.mxu0 0.0
        %582 = vmatmul.mubr.f32.gmra.mrb[0].mxu0 %v365
        %v583 = vpop.f32.mrb[0].mxu0
        %v584 = vadd.f32 0.0, %v583
        %v585 = vpop.f32.mrb[0].mxu0
        %586 = vmatprep.mubr.f32.mxu0 0.0
        %587 = vmatmul.mubr.f32.gmra.mrb[0].mxu0 %v368
        %v588 = vpop.f32.mrb[0].mxu0
        %v589 = vadd.f32 0.0, %v588
        %v590 = vpop.f32.mrb[0].mxu0
        %591 = vmatprep.mubr.f32.mxu0 0.0
        %592 = vmatmul.mubr.f32.gmra.mrb[0].mxu0 %v371
        %v593 = vpop.f32.mrb[0].mxu0
        %v594 = vadd.f32 0.0, %v593
        %v595 = vpop.f32.mrb[0].mxu0
        %596 = vmatprep.mubr.f32.mxu0 0.0
        %597 = vmatmul.mubr.f32.gmra.mrb[0].mxu0 %v374
        %v598 = vpop.f32.mrb[0].mxu0
        %v599 = vadd.f32 0.0, %v598
        %v600 = vpop.f32.mrb[0].mxu0
        %601 = vmatprep.mubr.f32.mxu0 0.0
        %602 = vmatmul.mubr.f32.gmra.mrb[0].mxu0 %v377
        %v603 = vpop.f32.mrb[0].mxu0
        %v604 = vadd.f32 0.0, %v603
        %v605 = vpop.f32.mrb[0].mxu0
        %606 = vdwg.mxu0
        %607 = vxpose.xlu0.b32.start [1/16] %v449, 128
        %608 = vxpose.xlu0.b32.cont [2/16] %v454, 128
        %609 = vxpose.xlu0.b32.cont [3/16] %v459, 128
        %610 = vxpose.xlu0.b32.cont [4/16] %v464, 128
        %611 = vxpose.xlu0.b32.cont [5/16] %v469, 128
        %612 = vxpose.xlu0.b32.cont [6/16] %v474, 128
        %613 = vxpose.xlu0.b32.cont [7/16] %v479, 128
        %614 = vxpose.xlu0.b32.cont [8/16] %v484, 128
        %615 = vxpose.xlu0.b32.cont [9/16] %v489, 128
        %616 = vxpose.xlu0.b32.cont [10/16] %v494, 128
        %617 = vxpose.xlu0.b32.cont [11/16] %v499, 128
        %618 = vxpose.xlu0.b32.cont [12/16] %v504, 128
        %619 = vxpose.xlu0.b32.cont [13/16] %v509, 128
        %620 = vxpose.xlu0.b32.cont [14/16] %v514, 128
        %621 = vxpose.xlu0.b32.cont [15/16] %v519, 128
        %622 = vxpose.xlu0.b32.end [16/16] %v524, 128
        %v623 = vpop.trf.xlu0
        %v624 = vpop.trf.xlu0
        %v625 = vpop.trf.xlu0
        %v626 = vpop.trf.xlu0
        %v627 = vpop.trf.xlu0
        %v628 = vpop.trf.xlu0
        %v629 = vpop.trf.xlu0
        %v630 = vpop.trf.xlu0
        %v631 = vpop.trf.xlu0
        %v632 = vpop.trf.xlu0
        %v633 = vpop.trf.xlu0
        %v634 = vpop.trf.xlu0
        %v635 = vpop.trf.xlu0
        %v636 = vpop.trf.xlu0
        %v637 = vpop.trf.xlu0
        %v638 = vpop.trf.xlu0
        %639 = vxpose.xlu0.b32.start [1/16] %v529, 128
        %640 = vxpose.xlu0.b32.cont [2/16] %v534, 128
        %641 = vxpose.xlu0.b32.cont [3/16] %v539, 128
        %642 = vxpose.xlu0.b32.cont [4/16] %v544, 128
        %643 = vxpose.xlu0.b32.cont [5/16] %v549, 128
        %644 = vxpose.xlu0.b32.cont [6/16] %v554, 128
        %645 = vxpose.xlu0.b32.cont [7/16] %v559, 128
        %646 = vxpose.xlu0.b32.cont [8/16] %v564, 128
        %647 = vxpose.xlu0.b32.cont [9/16] %v569, 128
        %648 = vxpose.xlu0.b32.cont [10/16] %v574, 128
        %649 = vxpose.xlu0.b32.cont [11/16] %v579, 128
        %650 = vxpose.xlu0.b32.cont [12/16] %v584, 128
        %651 = vxpose.xlu0.b32.cont [13/16] %v589, 128
        %652 = vxpose.xlu0.b32.cont [14/16] %v594, 128
        %653 = vxpose.xlu0.b32.cont [15/16] %v599, 128
        %654 = vxpose.xlu0.b32.end [16/16] %v604, 128
        %v655 = vpop.trf.xlu0
        %v656 = vpop.trf.xlu0
        %v657 = vpop.trf.xlu0
        %v658 = vpop.trf.xlu0
        %v659 = vpop.trf.xlu0
        %v660 = vpop.trf.xlu0
        %v661 = vpop.trf.xlu0
        %v662 = vpop.trf.xlu0
        %v663 = vpop.trf.xlu0
        %v664 = vpop.trf.xlu0
        %v665 = vpop.trf.xlu0
        %v666 = vpop.trf.xlu0
        %v667 = vpop.trf.xlu0
        %v668 = vpop.trf.xlu0
        %v669 = vpop.trf.xlu0
        %v670 = vpop.trf.xlu0
        %v671 = vld [vmem:[%s2] sm:$0xf]
        %673 = vset.pattern.permute.xlu0 0
        %674 = vperm.xlu0 %673, %v671
        %v675 = vpop.permute.xlu0 %674
        %v677 = vadd.f32 %v623, %v675
        %v678 = vadd.f32 %v655, %v675
        %v681 = vcombine.low %v677, %v678
        %683 = vst [vmem:[%s206] sm:$0xff] %v681
        %s684 = sand.u32 %s112, 1
        %s685 = scalar_lea.sflag [#allocation4], %s684
        %s686 = sand.u32 %s112, 1
        %s687 = smul.addr %s686, 8
        %s688 = scalar_lea.vmem [#allocation5], %s687
        // Predicated region
        $region37: #{tpu_custom_call.1} parent=31 // pred_check
          %p689 = pneg %p122
        $region38: #{tpu_custom_call.1} parent=31 // pred_check_branch
          %691 = sbr.rel (%p689) target = $region40
        $region39: #{tpu_custom_call.1} parent=31 // pred_region
          %s692 = smul.u32 2, %s25
          %s694 = ssub.s32 128, 128
          %695 = vsyncadd %s685, %s694
          %s696 = smul.addr %s24, 2
          %s697 = sadd.s32 %s692, %s696
          %s698 = smul.addr %s697, 64
          %s699 = scalar_lea.hbm %s3, %s698
          %s701 = sshll.u32 %s688, 4
          %s702 = int_to_ptr.vmem [resolvable:$true] %s701
          %704 = dma.vmem_to_hbm [thread:$0]  %s702, 128, %s699, %s685
        $region40: #{tpu_custom_call.1} parent=31 // pred_fallthru
          _
      $region32: #{tpu_custom_call.1} parent=5 // pred_fallthru
        _
      %p705 = scmp.le.s32.totalorder 2, %s15
      // Predicated region
      $region41: #{tpu_custom_call.1} parent=5 // pred_check
        %p706 = pneg %p705
      $region42: #{tpu_custom_call.1} parent=5 // pred_check_branch
        %708 = sbr.rel (%p706) target = $region44
      $region43: #{tpu_custom_call.1} parent=5 // pred_region
        %s709 = ssub.s32 %s15, 2
        // Predicated region
        $region45: #{tpu_custom_call.1} parent=43 // pred_check
          %p710 = pneg %p128
        $region46: #{tpu_custom_call.1} parent=43 // pred_check_branch
          %712 = sbr.rel (%p710) target = $region48
        $region47: #{tpu_custom_call.1} parent=43 // pred_region
          %s713 = sand.u32 %s113, 1
          %s714 = scalar_lea.sflag [#allocation4], %s713
          %s715 = sand.u32 %s113, 1
          %s716 = smul.addr %s715, 8
          %s717 = scalar_lea.vmem [#allocation5], %s716
          %718 = dma.done %s714, 128
        $region48: #{tpu_custom_call.1} parent=43 // pred_fallthru
          _
      $region44: #{tpu_custom_call.1} parent=5 // pred_fallthru
        _
    $region6: #{tpu_custom_call.1} parent=1 // loop_footer
      %s19 = sadd.s32 1, %s15
    $region7: #{tpu_custom_call.1} parent=1 // loop_footer_branch
      %14 = sbr.rel target = $region3
    $region8: #{tpu_custom_call.1} parent=1 // loop_exit
      _
    %719 = vsyncpa [#allocation3], 1
    %s720 = scalar_lea.sflag [#allocation3], 1
    %721 = vsyncpa %s720, 1
    %722 = vsyncpa [#allocation4], 1
    %s723 = scalar_lea.sflag [#allocation4], 1
    %724 = vsyncpa %s723, 1

</llo_original>
